<compile_context>
chip_gen: v6e
topology: v6e:2x2x1
jax: 0.10.0
libtpu: 0.0.40
codegen_flags: <defaults>
</compile_context>

<pallas_src>
import jax
import jax.numpy as jnp
from jax import lax
from jax.experimental import pallas as pl
from jax.experimental.pallas import tpu as pltpu


def _round_up(n, m):
    return ((n + m - 1) // m) * m


def _mlp_kernel(x_ref, w1_ref, b1_ref, w2_ref, b2_ref, w3_ref, b3_ref, o_ref):
    # x_ref: (TM, D) tile in the native (batch, features) layout.
    # All activations are (hidden, TM): batch on the lane axis -> lane-dense out.
    x = x_ref[...].astype(jnp.bfloat16)

    # Layer 1: contract over D without transposing x in HBM:
    # (32, D) . (TM, D) -> (32, TM), + bias column, ReLU (f32).
    w1 = w1_ref[...].astype(jnp.bfloat16)
    h1 = lax.dot_general(w1, x, dimension_numbers=(((1,), (1,)), ((), ())),
                         preferred_element_type=jnp.float32)
    h1 = jnp.maximum(h1 + b1_ref[...], 0.0)

    # Layer 2: (16, 32) @ (32, TM) -> (16, TM), + bias column, ReLU (f32).
    h2 = jnp.dot(w2_ref[...].astype(jnp.bfloat16), h1.astype(jnp.bfloat16),
                 preferred_element_type=jnp.float32)
    h2 = jnp.maximum(h2 + b2_ref[...], 0.0)

    # Layer 3: (1, 16) @ (16, TM) -> (1, TM), + bias, sigmoid via EUP tanh.
    logit = jnp.dot(w3_ref[...].astype(jnp.bfloat16), h2.astype(jnp.bfloat16),
                    preferred_element_type=jnp.float32) + b3_ref[...]
    o_ref[...] = (0.5 * (jnp.tanh(0.5 * logit) + 1.0)).astype(o_ref.dtype)


def titanic_forward(x, params, tile=8192):
    """Fused forward pass of TitanicModel.

    x: (batch, input_dim) float32 or bfloat16
    params: dict with PyTorch-layout weights:
        w1 (32, D), b1 (32, 1), w2 (16, 32), b2 (16, 1), w3 (1, 16), b3 (1, 1)
    returns: (batch, 1) float32 probabilities
    """
    batch, d = x.shape

    # Batch tile: multiple of 128 (lane width), capped by `tile`.
    tm = min(tile, _round_up(batch, 128))
    # Keep >= 2 grid steps once there is enough work (v7x dual-TC sharding of
    # the "parallel" batch axis + pipelined x DMA).
    if batch > 256 and pl.cdiv(batch, tm) < 2:
        tm = _round_up(pl.cdiv(batch, 2), 128)
    grid = (pl.cdiv(batch, tm),)

    n_weight_bytes = (32 * d + 32 + 16 * 32 + 16 + 16 + 1) * 4
    cost = pl.CostEstimate(
        flops=2 * batch * (d * 32 + 32 * 16 + 16 * 1),
        transcendentals=batch,
        bytes_accessed=batch * d * x.dtype.itemsize + batch * 4 + n_weight_bytes,
    )

    out = pl.pallas_call(
        _mlp_kernel,
        out_shape=jax.ShapeDtypeStruct((1, batch), jnp.float32),
        grid=grid,
        in_specs=[
            # x tile: native layout, new block per grid step (auto double-
            # buffered DMA). Ragged last block is handled by Pallas masking.
            pl.BlockSpec((tm, d), lambda i: (i, 0)),
            # Weights/biases: constant block index -> DMA'd once, VMEM-resident.
            pl.BlockSpec((32, d), lambda i: (0, 0)),
            pl.BlockSpec((32, 1), lambda i: (0, 0)),
            pl.BlockSpec((16, 32), lambda i: (0, 0)),
            pl.BlockSpec((16, 1), lambda i: (0, 0)),
            pl.BlockSpec((1, 16), lambda i: (0, 0)),
            pl.BlockSpec((1, 1), lambda i: (0, 0)),
        ],
        out_specs=pl.BlockSpec((1, tm), lambda i: (0, i)),
        compiler_params=pltpu.CompilerParams(
            dimension_semantics=("parallel",),
        ),
        cost_estimate=cost,
    )(x, params["w1"], params["b1"], params["w2"], params["b2"],
      params["w3"], params["b3"])

    # (1, batch) -> (batch, 1): identical linear order -> free reshape, no slice.
    return out.reshape(batch, 1)


def init_params(key, input_dim):
    """Deterministic init; same shapes/layout as the PyTorch module
    (nn.Linear stores weight as (out_features, in_features))."""
    k1, k2, k3, k4, k5, k6 = jax.random.split(key, 6)
    s1 = 1.0 / jnp.sqrt(float(input_dim))
    s2 = 1.0 / jnp.sqrt(32.0)
    s3 = 1.0 / jnp.sqrt(16.0)
    u = jax.random.uniform
    return {
        "w1": u(k1, (32, input_dim), jnp.float32, -s1, s1),
        "b1": u(k2, (32, 1), jnp.float32, -s1, s1),
        "w2": u(k3, (16, 32), jnp.float32, -s2, s2),
        "b2": u(k4, (16, 1), jnp.float32, -s2, s2),
        "w3": u(k5, (1, 16), jnp.float32, -s3, s3),
        "b3": u(k6, (1, 1), jnp.float32, -s3, s3),
    }


def reference_forward(x, p):
    x = x.astype(jnp.float32)
    h1 = jnp.maximum(x @ p["w1"].T + p["b1"].T, 0.0)
    h2 = jnp.maximum(h1 @ p["w2"].T + p["b2"].T, 0.0)
    return jax.nn.sigmoid(h2 @ p["w3"].T + p["b3"].T)


if __name__ == "__main__":
    key = jax.random.PRNGKey(0)
    kx, kp, kx2 = jax.random.split(key, 3)

    batch, input_dim = 8, 8  # small Titanic-like feature dimension
    x = jax.random.normal(kx, (batch, input_dim), dtype=jnp.float32)
    params = init_params(kp, input_dim)

    out = jax.block_until_ready(titanic_forward(x, params))
    ref = reference_forward(x, params)
    assert out.shape == (batch, 1)
    # bf16 MXU operands -> slightly looser tolerance on [0,1] probabilities.
    assert jnp.allclose(out, ref, atol=2e-2), float(jnp.max(jnp.abs(out - ref)))

    # Second check: ragged batch not a multiple of the tile -> multi-step grid
    # with masked last block (no padding pass).
    batch2 = 300
    x2 = jax.random.normal(kx2, (batch2, input_dim), dtype=jnp.float32)
    out2 = jax.block_until_ready(titanic_forward(x2, params, tile=128))
    ref2 = reference_forward(x2, params)
    assert out2.shape == (batch2, 1)
    assert jnp.allclose(out2, ref2, atol=2e-2), float(jnp.max(jnp.abs(out2 - ref2)))

    # Third check: bf16 input stream (halves the dominant HBM read traffic).
    out3 = jax.block_until_ready(titanic_forward(x2.astype(jnp.bfloat16), params))
    assert out3.shape == (batch2, 1)
    assert jnp.allclose(out3, ref2, atol=3e-2), float(jnp.max(jnp.abs(out3 - ref2)))

    print("KERNEL_OK")
</pallas_src>

<mosaic_0001>
module attributes {stable_mosaic.version = 11 : i64} {
  func.func @_mlp_kernel(%arg0: i32, %arg1: memref<128x8xf32, #tpu.memory_space<vmem>>, %arg2: memref<32x8xf32, #tpu.memory_space<vmem>>, %arg3: memref<32x1xf32, #tpu.memory_space<vmem>>, %arg4: memref<16x32xf32, #tpu.memory_space<vmem>>, %arg5: memref<16x1xf32, #tpu.memory_space<vmem>>, %arg6: memref<1x16xf32, #tpu.memory_space<vmem>>, %arg7: memref<1x1xf32, #tpu.memory_space<vmem>>, %arg8: memref<1x128xf32, #tpu.memory_space<vmem>>) attributes {dimension_semantics = [#tpu.dimension_semantics<parallel>], iteration_bounds = array<i64: 1>, scalar_prefetch = 0 : i64, scratch_operands = 0 : i64, tpu.core_type = #tpu.core_type<tc>, window_params = [{transform_indices = @transform_0, window_bounds = array<i64: 128, 8>}, {pipeline_mode = #tpu.pipeline_mode<synchronous>, transform_indices = @transform_1, window_bounds = array<i64: 32, 8>}, {pipeline_mode = #tpu.pipeline_mode<synchronous>, transform_indices = @transform_2, window_bounds = array<i64: 32, 1>}, {pipeline_mode = #tpu.pipeline_mode<synchronous>, transform_indices = @transform_3, window_bounds = array<i64: 16, 32>}, {pipeline_mode = #tpu.pipeline_mode<synchronous>, transform_indices = @transform_4, window_bounds = array<i64: 16, 1>}, {pipeline_mode = #tpu.pipeline_mode<synchronous>, transform_indices = @transform_5, window_bounds = array<i64: 1, 16>}, {pipeline_mode = #tpu.pipeline_mode<synchronous>, transform_indices = @transform_6, window_bounds = array<i64: 1, 1>}, {transform_indices = @transform_7, window_bounds = array<i64: 1, 128>}]} {
    %c0 = arith.constant 0 : index
    %c0_0 = arith.constant 0 : index
    %0 = vector.load %arg1[%c0, %c0_0] : memref<128x8xf32, #tpu.memory_space<vmem>>, vector<128x8xf32>
    %1 = arith.truncf %0 : vector<128x8xf32> to vector<128x8xbf16>
    %c0_1 = arith.constant 0 : index
    %c0_2 = arith.constant 0 : index
    %2 = vector.load %arg2[%c0_1, %c0_2] : memref<32x8xf32, #tpu.memory_space<vmem>>, vector<32x8xf32>
    %3 = arith.truncf %2 : vector<32x8xf32> to vector<32x8xbf16>
    %cst = arith.constant dense<0.000000e+00> : vector<32x128xf32>
    %4 = tpu.matmul %3, %1, %cst {dimension_numbers = #tpu.dot_dimension_numbers<[1], [1], [0], [0], [0, 0, 1, 0], [], []>} : vector<32x8xbf16>, vector<128x8xbf16>, vector<32x128xf32> -> vector<32x128xf32>
    %c0_3 = arith.constant 0 : index
    %c0_4 = arith.constant 0 : index
    %5 = vector.load %arg3[%c0_3, %c0_4] : memref<32x1xf32, #tpu.memory_space<vmem>>, vector<32x1xf32>
    %6 = vector.broadcast %5 : vector<32x1xf32> to vector<32x128xf32>
    %7 = arith.addf %4, %6 : vector<32x128xf32>
    %cst_5 = arith.constant 0.000000e+00 : f32
    %8 = vector.broadcast %cst_5 : f32 to vector<32x128xf32>
    %9 = arith.maximumf %7, %8 : vector<32x128xf32>
    %c0_6 = arith.constant 0 : index
    %c0_7 = arith.constant 0 : index
    %10 = vector.load %arg4[%c0_6, %c0_7] : memref<16x32xf32, #tpu.memory_space<vmem>>, vector<16x32xf32>
    %11 = arith.truncf %10 : vector<16x32xf32> to vector<16x32xbf16>
    %12 = arith.truncf %9 : vector<32x128xf32> to vector<32x128xbf16>
    %cst_8 = arith.constant dense<0.000000e+00> : vector<16x128xf32>
    %13 = tpu.matmul %11, %12, %cst_8 {dimension_numbers = #tpu.dot_dimension_numbers<[1], [0], [0], [1], [0, 0, 1, 1], [], []>} : vector<16x32xbf16>, vector<32x128xbf16>, vector<16x128xf32> -> vector<16x128xf32>
    %c0_9 = arith.constant 0 : index
    %c0_10 = arith.constant 0 : index
    %14 = vector.load %arg5[%c0_9, %c0_10] : memref<16x1xf32, #tpu.memory_space<vmem>>, vector<16x1xf32>
    %15 = vector.broadcast %14 : vector<16x1xf32> to vector<16x128xf32>
    %16 = arith.addf %13, %15 : vector<16x128xf32>
    %cst_11 = arith.constant 0.000000e+00 : f32
    %17 = vector.broadcast %cst_11 : f32 to vector<16x128xf32>
    %18 = arith.maximumf %16, %17 : vector<16x128xf32>
    %c0_12 = arith.constant 0 : index
    %c0_13 = arith.constant 0 : index
    %19 = vector.load %arg6[%c0_12, %c0_13] : memref<1x16xf32, #tpu.memory_space<vmem>>, vector<1x16xf32>
    %20 = arith.truncf %19 : vector<1x16xf32> to vector<1x16xbf16>
    %21 = arith.truncf %18 : vector<16x128xf32> to vector<16x128xbf16>
    %cst_14 = arith.constant dense<0.000000e+00> : vector<1x128xf32>
    %22 = tpu.matmul %20, %21, %cst_14 {dimension_numbers = #tpu.dot_dimension_numbers<[1], [0], [0], [1], [0, 0, 1, 1], [], []>} : vector<1x16xbf16>, vector<16x128xbf16>, vector<1x128xf32> -> vector<1x128xf32>
    %c0_15 = arith.constant 0 : index
    %c0_16 = arith.constant 0 : index
    %23 = vector.load %arg7[%c0_15, %c0_16] : memref<1x1xf32, #tpu.memory_space<vmem>>, vector<1x1xf32>
    %24 = vector.broadcast %23 : vector<1x1xf32> to vector<1x128xf32>
    %25 = arith.addf %22, %24 : vector<1x128xf32>
    %cst_17 = arith.constant 5.000000e-01 : f32
    %26 = vector.broadcast %cst_17 : f32 to vector<1x128xf32>
    %27 = arith.mulf %26, %25 : vector<1x128xf32>
    %28 = math.tanh %27 : vector<1x128xf32>
    %cst_18 = arith.constant 1.000000e+00 : f32
    %29 = vector.broadcast %cst_18 : f32 to vector<1x128xf32>
    %30 = arith.addf %28, %29 : vector<1x128xf32>
    %cst_19 = arith.constant 5.000000e-01 : f32
    %31 = vector.broadcast %cst_19 : f32 to vector<1x128xf32>
    %32 = arith.mulf %31, %30 : vector<1x128xf32>
    %c0_20 = arith.constant 0 : index
    %c0_21 = arith.constant 0 : index
    %33 = vector.load %arg8[%c0_20, %c0_21] : memref<1x128xf32, #tpu.memory_space<vmem>>, vector<1x128xf32>
    tpu.vector_store %arg8[%c0_20, %c0_21], %32 {strides = array<i32>} : memref<1x128xf32, #tpu.memory_space<vmem>>, vector<1x128xf32>,
    return
  }
  func.func @transform_0(%arg0: i32) -> (i32, i32) {
    %c0_i32 = arith.constant 0 : i32
    %c0_i32_0 = arith.constant 0 : i32
    return %arg0, %c0_i32 : i32, i32
  }
  func.func @transform_1(%arg0: i32) -> (i32, i32) {
    %c0_i32 = arith.constant 0 : i32
    %c0_i32_0 = arith.constant 0 : i32
    %c0_i32_1 = arith.constant 0 : i32
    return %c0_i32, %c0_i32_0 : i32, i32
  }
  func.func @transform_2(%arg0: i32) -> (i32, i32) {
    %c0_i32 = arith.constant 0 : i32
    %c0_i32_0 = arith.constant 0 : i32
    %c0_i32_1 = arith.constant 0 : i32
    return %c0_i32, %c0_i32_0 : i32, i32
  }
  func.func @transform_3(%arg0: i32) -> (i32, i32) {
    %c0_i32 = arith.constant 0 : i32
    %c0_i32_0 = arith.constant 0 : i32
    %c0_i32_1 = arith.constant 0 : i32
    return %c0_i32, %c0_i32_0 : i32, i32
  }
  func.func @transform_4(%arg0: i32) -> (i32, i32) {
    %c0_i32 = arith.constant 0 : i32
    %c0_i32_0 = arith.constant 0 : i32
    %c0_i32_1 = arith.constant 0 : i32
    return %c0_i32, %c0_i32_0 : i32, i32
  }
  func.func @transform_5(%arg0: i32) -> (i32, i32) {
    %c0_i32 = arith.constant 0 : i32
    %c0_i32_0 = arith.constant 0 : i32
    %c0_i32_1 = arith.constant 0 : i32
    return %c0_i32, %c0_i32_0 : i32, i32
  }
  func.func @transform_6(%arg0: i32) -> (i32, i32) {
    %c0_i32 = arith.constant 0 : i32
    %c0_i32_0 = arith.constant 0 : i32
    %c0_i32_1 = arith.constant 0 : i32
    return %c0_i32, %c0_i32_0 : i32, i32
  }
  func.func @transform_7(%arg0: i32) -> (i32, i32) {
    %c0_i32 = arith.constant 0 : i32
    %c0_i32_0 = arith.constant 0 : i32
    return %c0_i32, %arg0 : i32, i32
  }
}

</mosaic_0001>

<llo_original>
// kernel: tpu_custom_call.1
$region0: #{tpu_custom_call.1}
  #allocation0 [shape = 'u32[]', space=smem, size = 0x4, offset = 0x4, fixed_abs, tag = 'smem constant byte address 0x4 - core index']
  #allocation1 [shape = 'u32[144,128]{1,0:T(1,128)}', space=vmem, size = 0x12000, scoped, tag = 'internal scratch']
  #allocation2 [shape = 'f32[1,1]{1,0:T(1,128)S(1)}', space=vmem, size = 0x200, scoped, tag = 'scoped memory for tpu_custom_call.1']
  %s0 = inlined_call_operand.vmem [shape: f32[8,8], index: 0, kind: input, shape index: {}]
  %s1 = inlined_call_operand.vmem [shape: f32[32,8], index: 1, kind: input, shape index: {}]
  %s2 = inlined_call_operand.vmem [shape: f32[32,1], index: 2, kind: input, shape index: {}]
  %s3 = inlined_call_operand.vmem [shape: f32[16,32], index: 3, kind: input, shape index: {}]
  %s4 = inlined_call_operand.vmem [shape: f32[16,1], index: 4, kind: input, shape index: {}]
  %s5 = inlined_call_operand.vmem [shape: f32[1,16], index: 5, kind: input, shape index: {}]
  %s6 = inlined_call_operand.<no memory space> [shape: f32[1,1], index: 6, kind: input, shape index: {}]
  %s7 = inlined_call_operand.hbm [shape: f32[1,8], index: 7, kind: output, shape index: {}]
  %s8 = sld [smem:[#allocation0]]
  $region38: #{tpu_custom_call.1} parent=0
    _
  %s10 = ssub.s32 1, %s8
  %s11 = scalar_select 0, %s10, %s8
  %v12 = vstv %s6
  %13 = vst [vmem:[#allocation2] sm:$0x1] %v12
  $region1: #{tpu_custom_call.1} parent=0
    #allocation3 [shape = 'u8[512]{0}', space=vmem, size = 0x400, scoped, tag = 'output window, operand 0, single buffered']
    #allocation4 [shape = 's32[1]{0}', space=sflag, size = 0x4, scoped, tag = 'scoped memory for tpu_custom_call.1']
    %14 = vsyncpa [#allocation4], 0
    // Predicated region
    $region2: #{tpu_custom_call.1} parent=1 // pred_check
      _
    $region3: #{tpu_custom_call.1} parent=1 // pred_check_branch
      %16 = sbr.rel (0) target = $region5
    $region4: #{tpu_custom_call.1} parent=1 // pred_region
      _
    $region5: #{tpu_custom_call.1} parent=1 // pred_fallthru
      _
    // Predicated region
    $region6: #{tpu_custom_call.1} parent=1 // pred_check
      _
    $region7: #{tpu_custom_call.1} parent=1 // pred_check_branch
      %18 = sbr.rel (0) target = $region9
    $region8: #{tpu_custom_call.1} parent=1 // pred_region
      _
    $region9: #{tpu_custom_call.1} parent=1 // pred_fallthru
      _
    // Predicated region
    $region10: #{tpu_custom_call.1} parent=1 // pred_check
      _
    $region11: #{tpu_custom_call.1} parent=1 // pred_check_branch
      %20 = sbr.rel (0) target = $region13
    $region12: #{tpu_custom_call.1} parent=1 // pred_region
      _
    $region13: #{tpu_custom_call.1} parent=1 // pred_fallthru
      _
    // Predicated region
    $region14: #{tpu_custom_call.1} parent=1 // pred_check
      _
    $region15: #{tpu_custom_call.1} parent=1 // pred_check_branch
      %22 = sbr.rel (0) target = $region17
    $region16: #{tpu_custom_call.1} parent=1 // pred_region
      _
    $region17: #{tpu_custom_call.1} parent=1 // pred_fallthru
      _
    // Predicated region
    $region18: #{tpu_custom_call.1} parent=1 // pred_check
      _
    $region19: #{tpu_custom_call.1} parent=1 // pred_check_branch
      %24 = sbr.rel (0) target = $region21
    $region20: #{tpu_custom_call.1} parent=1 // pred_region
      _
    $region21: #{tpu_custom_call.1} parent=1 // pred_fallthru
      _
    // Predicated region
    $region22: #{tpu_custom_call.1} parent=1 // pred_check
      _
    $region23: #{tpu_custom_call.1} parent=1 // pred_check_branch
      %26 = sbr.rel (0) target = $region25
    $region24: #{tpu_custom_call.1} parent=1 // pred_region
      _
    $region25: #{tpu_custom_call.1} parent=1 // pred_fallthru
      _
    // Predicated region
    $region26: #{tpu_custom_call.1} parent=1 // pred_check
      _
    $region27: #{tpu_custom_call.1} parent=1 // pred_check_branch
      %28 = sbr.rel (0) target = $region29
    $region28: #{tpu_custom_call.1} parent=1 // pred_region
      _
    $region29: #{tpu_custom_call.1} parent=1 // pred_fallthru
      _
    %v30 = vld [vmem:[%s0] sm:$0xff]
    %v31 = vld [vmem:[%s0 + $0x8] sm:$0xff]
    %v32 = vld [vmem:[%s0 + $0x10] sm:$0xff]
    %v33 = vld [vmem:[%s0 + $0x18] sm:$0xff]
    %v34 = vld [vmem:[%s0 + $0x20] sm:$0xff]
    %v35 = vld [vmem:[%s0 + $0x28] sm:$0xff]
    %v36 = vld [vmem:[%s0 + $0x30] sm:$0xff]
    %v37 = vld [vmem:[%s0 + $0x38] sm:$0xff]
    %v38 = vld [vmem:[%s0 + $0x40] sm:$0xff]
    %v39 = vld [vmem:[%s0 + $0x48] sm:$0xff]
    %v40 = vld [vmem:[%s0 + $0x50] sm:$0xff]
    %v41 = vld [vmem:[%s0 + $0x58] sm:$0xff]
    %v42 = vld [vmem:[%s0 + $0x60] sm:$0xff]
    %v43 = vld [vmem:[%s0 + $0x68] sm:$0xff]
    %v44 = vld [vmem:[%s0 + $0x70] sm:$0xff]
    %v45 = vld [vmem:[%s0 + $0x78] sm:$0xff]
    %v46 = vpack.c.bf16 %v31, %v30
    %v47 = vpack.c.bf16 %v33, %v32
    %v48 = vpack.c.bf16 %v35, %v34
    %v49 = vpack.c.bf16 %v37, %v36
    %v50 = vpack.c.bf16 %v39, %v38
    %v51 = vpack.c.bf16 %v41, %v40
    %v52 = vpack.c.bf16 %v43, %v42
    %v53 = vpack.c.bf16 %v45, %v44
    %v54 = vld [vmem:[%s1] sm:$0xff]
    %v55 = vld [vmem:[%s1 + $0x8] sm:$0xff]
    %v56 = vld [vmem:[%s1 + $0x10] sm:$0xff]
    %v57 = vld [vmem:[%s1 + $0x18] sm:$0xff]
    %v58 = vpack.c.bf16 %v55, %v54
    %v59 = vpack.c.bf16 %v57, %v56
    %v60 = vld [vmem:[%s2] sm:$0xff]
    %v61 = vld [vmem:[%s2 + $0x8] sm:$0xff]
    %v62 = vld [vmem:[%s2 + $0x10] sm:$0xff]
    %v63 = vld [vmem:[%s2 + $0x18] sm:$0xff]
    %65 = vset.pattern.permute.xlu0 0
    %66 = vperm.xlu0 %65, %v60
    %v67 = vpop.permute.xlu0 %66
    %70 = vset.pattern.permute.xlu0 0
    %71 = vperm.xlu0 %70, %v61
    %v72 = vpop.permute.xlu0 %71
    %75 = vset.pattern.permute.xlu0 0
    %76 = vperm.xlu0 %75, %v62
    %v77 = vpop.permute.xlu0 %76
    %80 = vset.pattern.permute.xlu0 0
    %81 = vperm.xlu0 %80, %v63
    %v82 = vpop.permute.xlu0 %81
    %vm84 = vcmask 64512
    %v86 = vsel %vm84, %v58, 0
    %v89 = vsel %vm84, %v59, 0
    %v92 = vsel %vm84, %v46, 0
    %v95 = vsel %vm84, %v47, 0
    %v98 = vsel %vm84, %v48, 0
    %v101 = vsel %vm84, %v49, 0
    %v104 = vsel %vm84, %v50, 0
    %v107 = vsel %vm84, %v51, 0
    %v110 = vsel %vm84, %v52, 0
    %v113 = vsel %vm84, %v53, 0
    %115 = vmatprep.subr.bf16.mxu0 0
    %116 = vmatpush1.bf16.xpose.msra.mxu0 %v113
    %117 = vmatprep.subr.bf16.mxu0 0
    %118 = vmatpush1.bf16.xpose.msra.mxu0 %v110
    %119 = vmatprep.subr.bf16.mxu0 0
    %120 = vmatpush1.bf16.xpose.msra.mxu0 %v107
    %121 = vmatprep.subr.bf16.mxu0 0
    %122 = vmatpush1.bf16.xpose.msra.mxu0 %v104
    %123 = vmatprep.subr.bf16.mxu0 0
    %124 = vmatpush1.bf16.xpose.msra.mxu0 %v101
    %125 = vmatprep.subr.bf16.mxu0 0
    %126 = vmatpush1.bf16.xpose.msra.mxu0 %v98
    %127 = vmatprep.subr.bf16.mxu0 0
    %128 = vmatpush1.bf16.xpose.msra.mxu0 %v95
    %129 = vmatprep.subr.bf16.mxu0 0
    %130 = vmatpush1.bf16.xpose.msra.mxu0 %v92
    %131 = vmatprep.subr.bf16.mxu0 0
    %132 = vmatpush2.bf16.xpose.msra.mxu0 0
    %133 = vmatprep.subr.bf16.mxu0 0
    %134 = vmatpush2.bf16.xpose.msra.mxu0 0
    %135 = vmatprep.subr.bf16.mxu0 0
    %136 = vmatpush2.bf16.xpose.msra.mxu0 0
    %137 = vmatprep.subr.bf16.mxu0 0
    %138 = vmatpush2.bf16.xpose.msra.mxu0 0
    %139 = vmatprep.subr.bf16.mxu0 0
    %140 = vmatpush2.bf16.xpose.msra.mxu0 0
    %141 = vmatprep.subr.bf16.mxu0 0
    %142 = vmatpush2.bf16.xpose.msra.mxu0 0
    %143 = vmatprep.subr.bf16.mxu0 0
    %144 = vmatpush2.bf16.xpose.msra.mxu0 0
    %145 = vmatprep.subr.bf16.mxu0 0
    %146 = vmatpush2.bf16.xpose.msra.mxu0 0
    %147 = vmatprep.mubr.bf16.mxu0 0
    %148 = vmatmul.mubr.bf16.gmra.mxu0 %v86
    %v149 = vpop.f32.mrf.mxu0
    %v150 = vadd.f32 %v67, %v149
    %v151 = vpop.f32.mrf.mxu0
    %v152 = vpop.f32.mrf.mxu0
    %v153 = vadd.f32 %v72, %v152
    %v154 = vpop.f32.mrf.mxu0
    %155 = vmatprep.mubr.bf16.mxu0 0
    %156 = vmatmul.mubr.bf16.gmra.mxu0 %v89
    %v157 = vpop.f32.mrf.mxu0
    %v158 = vadd.f32 %v77, %v157
    %v159 = vpop.f32.mrf.mxu0
    %v160 = vpop.f32.mrf.mxu0
    %v161 = vadd.f32 %v82, %v160
    %v162 = vpop.f32.mrf.mxu0
    %163 = vdwg.mxu0
    %v164 = vmax.f32 %v150, 0.0
    %v165 = vmax.f32 %v153, 0.0
    %v166 = vmax.f32 %v158, 0.0
    %v167 = vmax.f32 %v161, 0.0
    %v168 = vld [vmem:[%s3] sm:$0xff]
    %v169 = vld [vmem:[%s3 + $0x8] sm:$0xff]
    %v170 = vpack.c.bf16 %v169, %v168
    %v171 = vpack.c.bf16 %v165, %v164
    %v172 = vpack.c.bf16 %v167, %v166
    %v173 = vld [vmem:[%s4] sm:$0xff]
    %v174 = vld [vmem:[%s4 + $0x8] sm:$0xff]
    %176 = vset.pattern.permute.xlu0 0
    %177 = vperm.xlu0 %176, %v173
    %v178 = vpop.permute.xlu0 %177
    %181 = vset.pattern.permute.xlu0 0
    %182 = vperm.xlu0 %181, %v174
    %v183 = vpop.permute.xlu0 %182
    %vm185 = vcmask 261120
    %v187 = vsel %vm185, %v170, 0
    %189 = vmatprep.subr.bf16.mxu0 0
    %190 = vmatpush1.bf16.msra.mxu0 0
    %191 = vmatprep.subr.bf16.mxu0 0
    %192 = vmatpush1.bf16.msra.mxu0 0
    %193 = vmatprep.subr.bf16.mxu0 0
    %194 = vmatpush1.bf16.msra.mxu0 0
    %195 = vmatprep.subr.bf16.mxu0 0
    %196 = vmatpush1.bf16.msra.mxu0 0
    %197 = vmatprep.subr.bf16.mxu0 0
    %198 = vmatpush1.bf16.msra.mxu0 0
    %199 = vmatprep.subr.bf16.mxu0 0
    %200 = vmatpush1.bf16.msra.mxu0 0
    %201 = vmatprep.subr.bf16.mxu0 0
    %202 = vmatpush1.bf16.msra.mxu0 %v172
    %203 = vmatprep.subr.bf16.mxu0 0
    %204 = vmatpush1.bf16.msra.mxu0 %v171
    %205 = vmatprep.subr.bf16.mxu0 0
    %206 = vmatpush2.bf16.msra.mxu0 0
    %207 = vmatprep.subr.bf16.mxu0 0
    %208 = vmatpush2.bf16.msra.mxu0 0
    %209 = vmatprep.subr.bf16.mxu0 0
    %210 = vmatpush2.bf16.msra.mxu0 0
    %211 = vmatprep.subr.bf16.mxu0 0
    %212 = vmatpush2.bf16.msra.mxu0 0
    %213 = vmatprep.subr.bf16.mxu0 0
    %214 = vmatpush2.bf16.msra.mxu0 0
    %215 = vmatprep.subr.bf16.mxu0 0
    %216 = vmatpush2.bf16.msra.mxu0 0
    %217 = vmatprep.subr.bf16.mxu0 0
    %218 = vmatpush2.bf16.msra.mxu0 0
    %219 = vmatprep.subr.bf16.mxu0 0
    %220 = vmatpush2.bf16.msra.mxu0 0
    %221 = vmatprep.mubr.bf16.mxu0 0
    %222 = vmatmul.mubr.bf16.gmra.mxu0 %v187
    %v223 = vpop.f32.mrf.mxu0
    %v224 = vadd.f32 %v178, %v223
    %v225 = vpop.f32.mrf.mxu0
    %v226 = vpop.f32.mrf.mxu0
    %v227 = vadd.f32 %v183, %v226
    %v228 = vpop.f32.mrf.mxu0
    %229 = vdwg.mxu0
    %v230 = vmax.f32 %v224, 0.0
    %v231 = vmax.f32 %v227, 0.0
    %v232 = vld [vmem:[%s5] sm:$0x1]
    %v233 = vpack.c.bf16 %v232, %v232
    %v234 = vpack.c.bf16 %v231, %v230
    %v235 = vld [vmem:[#allocation2] sm:$0x1]
    %237 = vset.pattern.permute.xlu0 0
    %238 = vperm.xlu0 %237, %v235
    %v239 = vpop.permute.xlu0 %238
    %v241 = vlaneseq
    %v242 = vshrl.u32 %v241, 7
    %v243 = vsub.s32 0, %v242
    %v244 = vrot.slane %v239, %v243
    %vm245 = vcmask 130048
    %v247 = vsel %vm245, %v233, 0
    %249 = vmatprep.subr.bf16.mxu0 0
    %250 = vmatpush1.bf16.msra.mxu0 0
    %251 = vmatprep.subr.bf16.mxu0 0
    %252 = vmatpush1.bf16.msra.mxu0 0
    %253 = vmatprep.subr.bf16.mxu0 0
    %254 = vmatpush1.bf16.msra.mxu0 0
    %255 = vmatprep.subr.bf16.mxu0 0
    %256 = vmatpush1.bf16.msra.mxu0 0
    %257 = vmatprep.subr.bf16.mxu0 0
    %258 = vmatpush1.bf16.msra.mxu0 0
    %259 = vmatprep.subr.bf16.mxu0 0
    %260 = vmatpush1.bf16.msra.mxu0 0
    %261 = vmatprep.subr.bf16.mxu0 0
    %262 = vmatpush1.bf16.msra.mxu0 0
    %263 = vmatprep.subr.bf16.mxu0 0
    %264 = vmatpush1.bf16.msra.mxu0 %v234
    %265 = vmatprep.subr.bf16.mxu0 0
    %266 = vmatpush2.bf16.msra.mxu0 0
    %267 = vmatprep.subr.bf16.mxu0 0
    %268 = vmatpush2.bf16.msra.mxu0 0
    %269 = vmatprep.subr.bf16.mxu0 0
    %270 = vmatpush2.bf16.msra.mxu0 0
    %271 = vmatprep.subr.bf16.mxu0 0
    %272 = vmatpush2.bf16.msra.mxu0 0
    %273 = vmatprep.subr.bf16.mxu0 0
    %274 = vmatpush2.bf16.msra.mxu0 0
    %275 = vmatprep.subr.bf16.mxu0 0
    %276 = vmatpush2.bf16.msra.mxu0 0
    %277 = vmatprep.subr.bf16.mxu0 0
    %278 = vmatpush2.bf16.msra.mxu0 0
    %279 = vmatprep.subr.bf16.mxu0 0
    %280 = vmatpush2.bf16.msra.mxu0 0
    %281 = vmatprep.mubr.bf16.mxu0 0
    %282 = vmatmul.mubr.bf16.gmra.mxu0 %v247
    %v283 = vpop.f32.mrf.mxu0
    %v284 = vadd.f32 %v244, %v283
    %v285 = vpop.f32.mrf.mxu0
    %v286 = vpop.f32.mrf.mxu0
    %v287 = vpop.f32.mrf.mxu0
    %288 = vdwg.mxu0
    %v289 = vmul.f32 %v284, 0.5
    %v290 = vtanh.pop %v289
    %v291 = vadd.f32 %v290, 1.0
    %v292 = vmul.f32 %v291, 0.5
    %293 = vst [vmem:[#allocation3] sm:$0x1] %v292
    // Predicated region
    $region30: #{tpu_custom_call.1} parent=1 // pred_check
      _
    $region31: #{tpu_custom_call.1} parent=1 // pred_check_branch
      %295 = sbr.rel (0) target = $region33
    $region32: #{tpu_custom_call.1} parent=1 // pred_region
      %s297 = ssub.s32 16, 16
      %298 = vsyncadd [#allocation4], %s297
      %s300 = sshll.u32 [#allocation3], 4
      %s301 = int_to_ptr.vmem [resolvable:$true] %s300
      %303 = dma.vmem_to_hbm [thread:$0]  %s301, 16, %s7, [#allocation4]
    $region33: #{tpu_custom_call.1} parent=1 // pred_fallthru
      _
    // Predicated region
    $region34: #{tpu_custom_call.1} parent=1 // pred_check
      _
    $region35: #{tpu_custom_call.1} parent=1 // pred_check_branch
      %305 = sbr.rel (0) target = $region37
    $region36: #{tpu_custom_call.1} parent=1 // pred_region
      %306 = dma.done [#allocation4], 16
    $region37: #{tpu_custom_call.1} parent=1 // pred_fallthru
      _
    %307 = vsyncpa [#allocation4], 1

</llo_original>
